<compile_context>
chip_gen: v7x
topology: tpu7x:2x2x1
jax: 0.10.0
libtpu: 0.0.40
codegen_flags: <defaults>
</compile_context>

<pallas_src>
import functools
import math

import jax
import jax.numpy as jnp
from jax.experimental import pallas as pl
from jax.experimental.pallas import tpu as pltpu

MIN_NORM = 1e-15


def _round_up(v, m):
    return (v + m - 1) // m * m


def poincare_kernel(x_ref, pa_ref, x2_ref, stats_ref, o_ref, acc_ref, *, c, to):
    k = pl.program_id(2)

    # One MXU matmul per step against the stacked [p | a] operand (f32 accum).
    prod = jnp.dot(x_ref[...], pa_ref[...], preferred_element_type=jnp.float32)

    @pl.when(k == 0)
    def _():
        acc_ref[...] = prod

    @pl.when(k > 0)
    def _():
        acc_ref[...] += prod

    @pl.when(k == pl.num_programs(2) - 1)
    def _():
        xpa = acc_ref[...]                      # (tb, 2*to) f32
        xp = xpa[:, :to]                        # <x, p_k>
        xa = xpa[:, to:]                        # <x, a_k>

        stats = stats_ref[...]                  # (8, to) hoisted weight stats
        neg_pa = stats[0:1, :]                  # -<p_k, a_k>
        p2 = stats[1:2, :]                      # ||p_k||^2
        inv_a_norm = stats[2:3, :]              # 1 / max(||a_k||, MIN_NORM)
        x2 = x2_ref[...]                        # (tb, 1), precomputed in wrapper

        c_ = jnp.float32(c)
        two_sqrt_c = jnp.float32(2.0 * math.sqrt(c))
        inv_sqrt_c = jnp.float32(1.0 / math.sqrt(c))

        # Mobius add (-p_k) (+)_c x_b, algebraically expanded (u = -p_k, v = x_b).
        uv = -xp                                # <u, v>
        two_c_uv = (2.0 * c_) * uv
        alpha = 1.0 + two_c_uv + c_ * x2        # (tb, to)
        beta = 1.0 - c_ * p2                    # (1, to)
        denom_m = 1.0 + two_c_uv + (c_ * c_) * p2 * x2

        # <diff, a_k>*denom_m and ||diff||^2*denom_m^2 (never materialize diff).
        sc_raw = alpha * neg_pa + beta * xa
        d2 = alpha * alpha * p2 + 2.0 * (alpha * beta) * uv + beta * beta * x2

        # Fused: z = 2*sqrt(c)*sc_raw*denom_m*inv_a_norm / (denom_m^2 - c*d2);
        # single approx EUP reciprocal.
        den = jnp.maximum(denom_m * denom_m - c_ * d2, MIN_NORM)
        z = (two_sqrt_c * sc_raw) * denom_m * inv_a_norm \
            * pl.reciprocal(den, approx=True)

        # Sign-safe asinh: sign(z) * log(|z| + sqrt(z^2 + 1)).
        az = jnp.abs(z)
        asinh_abs = jnp.log(az + jnp.sqrt(az * az + 1.0))
        res = jnp.where(z < 0.0, -asinh_abs, asinh_abs) * inv_sqrt_c
        o_ref[...] = res.astype(o_ref.dtype)


def poincare_layer(x, weight, bias_p, c, *, tb=256, to=512, tk=None,
                   mm_dtype=jnp.bfloat16):
    """x: (B, K); weight (tangent normals a_k): (O, K); bias_p (ball points p_k): (O, K)."""
    B, K = x.shape
    O, K2 = weight.shape
    assert K2 == K and bias_p.shape == (O, K)
    f32 = jnp.float32
    out_dtype = x.dtype

    # ---- output tiling: O padded to a multiple of 128 -> lane-dense stores ----
    O_pad = _round_up(O, 128)
    to = min(to, O_pad)
    O_pad = _round_up(O_pad, to)
    no = O_pad // to

    # ---- batch tiling ----
    tb = min(tb, _round_up(B, 8))
    B_pad = _round_up(B, tb)
    nb = B_pad // tb

    # v7x has 2 TensorCores: make sure some 'parallel' axis has >= 2 steps.
    if no == 1 and nb == 1:
        if to >= 256 and to % 256 == 0:
            to //= 2
            no = 2
        elif tb >= 16 and tb % 16 == 0:
            tb //= 2
            nb = 2
            B_pad = _round_up(B, tb) * 0 + nb * tb  # B_pad unchanged (== 2*tb)

    # ---- contraction (K) tiling: full-extent for moderate K, tiled otherwise ----
    if tk is None:
        tk = K if K <= 2048 else 1024
    if tk >= K:
        tk = K
        K_pad = K
    else:
        tk = _round_up(tk, 128)          # lane constraint on the streamed x block
        K_pad = _round_up(K, tk)
    nk = K_pad // tk

    # ---- hoisted weight/bias preprocessing (once, outside the grid loop) ----
    a_p = jnp.pad(weight.astype(f32), ((0, O_pad - O), (0, K_pad - K)))   # (O_pad, K_pad)
    p_p = jnp.pad(bias_p.astype(f32), ((0, O_pad - O), (0, K_pad - K)))   # (O_pad, K_pad)

    # Pre-transposed, tile-interleaved stacked operand: column block j (width 2*to)
    # is [p_tile_j | a_tile_j] -> one matmul per grid step yields xp and xa.
    pa_stacked = jnp.concatenate(
        [p_p.T.reshape(K_pad, no, to), a_p.T.reshape(K_pad, no, to)], axis=2
    ).reshape(K_pad, 2 * O_pad).astype(mm_dtype)

    pa_dot = jnp.sum(p_p * a_p, axis=-1)                                   # (O_pad,)
    p2 = jnp.sum(p_p * p_p, axis=-1)
    inv_a_norm = 1.0 / jnp.maximum(jnp.sqrt(jnp.sum(a_p * a_p, axis=-1)), MIN_NORM)
    stats = jnp.zeros((8, O_pad), f32)
    stats = stats.at[0].set(-pa_dot).at[1].set(p2).at[2].set(inv_a_norm)

    x_f32 = jnp.pad(x.astype(f32), ((0, B_pad - B), (0, K_pad - K)))
    x2 = jnp.sum(x_f32 * x_f32, axis=-1, keepdims=True)                    # (B_pad, 1) f32
    x_mm = x_f32.astype(mm_dtype)

    # ---- VMEM budget: actual tiles + headroom, capped at ~3/4 physical VMEM ----
    mm_bytes = jnp.dtype(mm_dtype).itemsize
    out_bytes = jnp.dtype(out_dtype).itemsize
    vmem_est = (2 * (tb * tk * mm_bytes            # x tile (double-buffered)
                     + tk * 2 * to * mm_bytes      # [p|a] tile
                     + tb * 4                      # ||x||^2 tile
                     + 8 * to * 4                  # weight stats tile
                     + tb * to * out_bytes)        # output tile
                + tb * 2 * to * 4                  # f32 accumulator scratch
                + 12 * tb * to * 4)                # epilogue f32 temporaries
    try:
        phys_vmem = pltpu.get_tpu_info().vmem_capacity_bytes
    except Exception:
        phys_vmem = 64 * 1024 * 1024               # conservative (v7x per-TC)
    vmem_limit = int(min(max(vmem_est * 3 // 2, 32 * 1024 * 1024),
                         phys_vmem * 3 // 4))

    out = pl.pallas_call(
        functools.partial(poincare_kernel, c=float(c), to=to),
        out_shape=jax.ShapeDtypeStruct((B_pad, O_pad), out_dtype),
        grid_spec=pltpu.PrefetchScalarGridSpec(
            num_scalar_prefetch=0,
            grid=(no, nb, nk),                     # [p|a] resident across batch axis
            in_specs=[
                pl.BlockSpec((tb, tk), lambda j, i, k: (i, k)),       # x (streamed)
                pl.BlockSpec((tk, 2 * to), lambda j, i, k: (k, j)),   # [p|a]
                pl.BlockSpec((tb, 1), lambda j, i, k: (i, 0)),        # ||x||^2
                pl.BlockSpec((8, to), lambda j, i, k: (0, j)),        # weight stats
            ],
            out_specs=pl.BlockSpec((tb, to), lambda j, i, k: (i, j)),
            scratch_shapes=[pltpu.VMEM((tb, 2 * to), jnp.float32)],
        ),
        compiler_params=pltpu.CompilerParams(
            dimension_semantics=("parallel", "parallel", "arbitrary"),
            vmem_limit_bytes=vmem_limit,
        ),
    )(x_mm, pa_stacked, x2, stats)
    return out[:B, :O]


# ------------------ pure-JAX reference (explicit Mobius add) ------------------
def mobius_add(u, v, c):
    uv = jnp.sum(u * v, axis=-1, keepdims=True)
    u2 = jnp.sum(u * u, axis=-1, keepdims=True)
    v2 = jnp.sum(v * v, axis=-1, keepdims=True)
    num = (1.0 + 2.0 * c * uv + c * v2) * u + (1.0 - c * u2) * v
    den = jnp.maximum(1.0 + 2.0 * c * uv + c * c * u2 * v2, MIN_NORM)
    return num / den


def ref_forward(x, a, p, c):
    sqrt_c = math.sqrt(c)
    xe = x[:, None, :]          # (B,1,K)
    pe = p[None, :, :]          # (1,O,K)
    ae = a[None, :, :]          # (1,O,K)
    diff = mobius_add(-pe, xe, c)                                  # (B,O,K)
    diff2 = jnp.maximum(jnp.sum(diff * diff, axis=-1), MIN_NORM)   # (B,O)
    sc = jnp.sum(diff * ae, axis=-1)                               # (B,O)
    a_norm = jnp.maximum(jnp.linalg.norm(ae, axis=-1), MIN_NORM)   # (1,O)
    num = 2.0 * sqrt_c * sc
    den = jnp.maximum((1.0 - c * diff2) * a_norm, MIN_NORM)
    return jnp.arcsinh(num / den) / sqrt_c


def _make_inputs(key, batch, in_features, out_features, c):
    sqrt_c = math.sqrt(c)
    kx, kw, kb = jax.random.split(key, 3)
    # Input points strictly inside the Poincare ball of radius 1/sqrt(c).
    x_raw = jax.random.normal(kx, (batch, in_features), dtype=jnp.float32)
    x = x_raw * (0.3 / sqrt_c) / (1.0 + jnp.linalg.norm(x_raw, axis=-1, keepdims=True))
    weight = jax.random.normal(kw, (out_features, in_features), dtype=jnp.float32) \
        * (1.0 / math.sqrt(in_features))
    b_raw = jax.random.normal(kb, (out_features, in_features), dtype=jnp.float32)
    bias_p = b_raw * (0.05 / sqrt_c) / (1.0 + jnp.linalg.norm(b_raw, axis=-1, keepdims=True))
    return x, weight, bias_p


if __name__ == "__main__":
    c = 0.7

    # 1) default path: bf16 MXU operands, full-K extent, resident [p|a] operand.
    x, w, p = _make_inputs(jax.random.PRNGKey(0), 16, 32, 64, c)
    out = jax.block_until_ready(poincare_layer(x, w, p, c))
    ref = ref_forward(x, w, p, c)
    assert out.shape == (16, 64)
    err = float(jnp.max(jnp.abs(out - ref)))
    assert jnp.allclose(out, ref, rtol=2e-2, atol=2e-2), err

    # 2) f32 MXU path (tighter tolerance; single approx reciprocal in epilogue).
    out32 = jax.block_until_ready(poincare_layer(x, w, p, c, mm_dtype=jnp.float32))
    err32 = float(jnp.max(jnp.abs(out32 - ref)))
    assert jnp.allclose(out32, ref, rtol=5e-3, atol=5e-3), err32

    # 3) K-tiled reduction path (3rd 'arbitrary' grid axis) + parallel-axis split.
    x3, w3, p3 = _make_inputs(jax.random.PRNGKey(1), 16, 256, 192, c)
    out3 = jax.block_until_ready(
        poincare_layer(x3, w3, p3, c, tk=128, mm_dtype=jnp.float32))
    ref3 = ref_forward(x3, w3, p3, c)
    assert out3.shape == (16, 192)
    err3 = float(jnp.max(jnp.abs(out3 - ref3)))
    assert jnp.allclose(out3, ref3, rtol=5e-3, atol=5e-3), err3

    print("KERNEL_OK")
</pallas_src>

<mosaic_0001>
module attributes {stable_mosaic.version = 11 : i64} {
  func.func @poincare_kernel(%arg0: i32, %arg1: i32, %arg2: i32, %arg3: memref<8x32xbf16, #tpu.memory_space<vmem>>, %arg4: memref<32x256xbf16, #tpu.memory_space<vmem>>, %arg5: memref<8x1xf32, #tpu.memory_space<vmem>>, %arg6: memref<8x128xf32, #tpu.memory_space<vmem>>, %arg7: memref<8x128xf32, #tpu.memory_space<vmem>>, %arg8: memref<8x256xf32, #tpu.memory_space<vmem>>) attributes {dimension_semantics = [#tpu.dimension_semantics<parallel>, #tpu.dimension_semantics<parallel>, #tpu.dimension_semantics<arbitrary>], iteration_bounds = array<i64: 1, 2, 1>, scalar_prefetch = 0 : i64, scratch_operands = 1 : i64, tpu.core_type = #tpu.core_type<tc>, window_params = [{transform_indices = @transform_0, window_bounds = array<i64: 8, 32>}, {transform_indices = @transform_1, window_bounds = array<i64: 32, 256>}, {transform_indices = @transform_2, window_bounds = array<i64: 8, 1>}, {transform_indices = @transform_3, window_bounds = array<i64: 8, 128>}, {transform_indices = @transform_4, window_bounds = array<i64: 8, 128>}]} {
    %c0 = arith.constant 0 : index
    %c0_0 = arith.constant 0 : index
    %0 = vector.load %arg3[%c0, %c0_0] : memref<8x32xbf16, #tpu.memory_space<vmem>>, vector<8x32xbf16>
    %c0_1 = arith.constant 0 : index
    %c0_2 = arith.constant 0 : index
    %1 = vector.load %arg4[%c0_1, %c0_2] : memref<32x256xbf16, #tpu.memory_space<vmem>>, vector<32x256xbf16>
    %cst = arith.constant dense<0.000000e+00> : vector<8x256xf32>
    %2 = tpu.matmul %0, %1, %cst {dimension_numbers = #tpu.dot_dimension_numbers<[1], [0], [0], [1], [0, 0, 1, 1], [], []>} : vector<8x32xbf16>, vector<32x256xbf16>, vector<8x256xf32> -> vector<8x256xf32>
    %c0_i32 = arith.constant 0 : i32
    %3 = arith.cmpi eq, %arg2, %c0_i32 : i32
    %4 = arith.extui %3 : i1 to i32
    %c0_i32_3 = arith.constant 0 : i32
    %5 = arith.cmpi ne, %4, %c0_i32_3 : i32
    scf.if %5 {
      %c0_8 = arith.constant 0 : index
      %c0_9 = arith.constant 0 : index
      %12 = vector.load %arg8[%c0_8, %c0_9] : memref<8x256xf32, #tpu.memory_space<vmem>>, vector<8x256xf32>
      tpu.vector_store %arg8[%c0_8, %c0_9], %2 {strides = array<i32>} : memref<8x256xf32, #tpu.memory_space<vmem>>, vector<8x256xf32>,
    } else {
    }
    %c0_i32_4 = arith.constant 0 : i32
    %6 = arith.cmpi sgt, %arg2, %c0_i32_4 : i32
    %7 = arith.extui %6 : i1 to i32
    %c0_i32_5 = arith.constant 0 : i32
    %8 = arith.cmpi ne, %7, %c0_i32_5 : i32
    scf.if %8 {
      %c0_8 = arith.constant 0 : index
      %c0_9 = arith.constant 0 : index
      %12 = vector.load %arg8[%c0_8, %c0_9] : memref<8x256xf32, #tpu.memory_space<vmem>>, vector<8x256xf32>
      %13 = arith.addf %12, %2 : vector<8x256xf32>
      %c0_10 = arith.constant 0 : index
      %c0_11 = arith.constant 0 : index
      %14 = vector.load %arg8[%c0_10, %c0_11] : memref<8x256xf32, #tpu.memory_space<vmem>>, vector<8x256xf32>
      tpu.vector_store %arg8[%c0_10, %c0_11], %13 {strides = array<i32>} : memref<8x256xf32, #tpu.memory_space<vmem>>, vector<8x256xf32>,
    } else {
    }
    %c0_i32_6 = arith.constant 0 : i32
    %9 = arith.cmpi eq, %arg2, %c0_i32_6 : i32
    %10 = arith.extui %9 : i1 to i32
    %c0_i32_7 = arith.constant 0 : i32
    %11 = arith.cmpi ne, %10, %c0_i32_7 : i32
    scf.if %11 {
      %c0_8 = arith.constant 0 : index
      %c0_9 = arith.constant 0 : index
      %12 = vector.load %arg8[%c0_8, %c0_9] : memref<8x256xf32, #tpu.memory_space<vmem>>, vector<8x256xf32>
      %13 = vector.extract_strided_slice %12 {offsets = [0, 0], sizes = [8, 128], strides = [1, 1]} : vector<8x256xf32> to vector<8x128xf32>
      %14 = vector.extract_strided_slice %12 {offsets = [0, 128], sizes = [8, 128], strides = [1, 1]} : vector<8x256xf32> to vector<8x128xf32>
      %c0_10 = arith.constant 0 : index
      %c0_11 = arith.constant 0 : index
      %15 = vector.load %arg6[%c0_10, %c0_11] : memref<8x128xf32, #tpu.memory_space<vmem>>, vector<8x128xf32>
      %16 = vector.extract_strided_slice %15 {offsets = [0, 0], sizes = [1, 128], strides = [1, 1]} : vector<8x128xf32> to vector<1x128xf32>
      %17 = vector.extract_strided_slice %15 {offsets = [1, 0], sizes = [1, 128], strides = [1, 1]} : vector<8x128xf32> to vector<1x128xf32>
      %18 = vector.extract_strided_slice %15 {offsets = [2, 0], sizes = [1, 128], strides = [1, 1]} : vector<8x128xf32> to vector<1x128xf32>
      %c0_12 = arith.constant 0 : index
      %c0_13 = arith.constant 0 : index
      %19 = vector.load %arg5[%c0_12, %c0_13] : memref<8x1xf32, #tpu.memory_space<vmem>>, vector<8x1xf32>
      %cst_14 = arith.constant 0.000000e+00 : f32
      %20 = vector.broadcast %cst_14 : f32 to vector<8x128xf32>
      %21 = arith.subf %20, %13 : vector<8x128xf32>
      %cst_15 = arith.constant 2.000000e+00 : f32
      %cst_16 = arith.constant 0.699999988 : f32
      %22 = arith.mulf %cst_15, %cst_16 : f32
      %23 = vector.broadcast %22 : f32 to vector<8x128xf32>
      %24 = arith.mulf %23, %21 : vector<8x128xf32>
      %cst_17 = arith.constant 1.000000e+00 : f32
      %25 = vector.broadcast %cst_17 : f32 to vector<8x128xf32>
      %26 = arith.addf %25, %24 : vector<8x128xf32>
      %cst_18 = arith.constant 0.699999988 : f32
      %27 = vector.broadcast %cst_18 : f32 to vector<8x1xf32>
      %28 = arith.mulf %27, %19 : vector<8x1xf32>
      %29 = vector.broadcast %28 : vector<8x1xf32> to vector<8x128xf32>
      %30 = arith.addf %26, %29 : vector<8x128xf32>
      %cst_19 = arith.constant 0.699999988 : f32
      %31 = vector.broadcast %cst_19 : f32 to vector<1x128xf32>
      %32 = arith.mulf %31, %17 : vector<1x128xf32>
      %cst_20 = arith.constant 1.000000e+00 : f32
      %33 = vector.broadcast %cst_20 : f32 to vector<1x128xf32>
      %34 = arith.subf %33, %32 : vector<1x128xf32>
      %cst_21 = arith.constant 1.000000e+00 : f32
      %35 = vector.broadcast %cst_21 : f32 to vector<8x128xf32>
      %36 = arith.addf %35, %24 : vector<8x128xf32>
      %cst_22 = arith.constant 0.699999988 : f32
      %cst_23 = arith.constant 0.699999988 : f32
      %37 = arith.mulf %cst_22, %cst_23 : f32
      %38 = vector.broadcast %37 : f32 to vector<1x128xf32>
      %39 = arith.mulf %38, %17 : vector<1x128xf32>
      %40 = vector.broadcast %39 : vector<1x128xf32> to vector<8x128xf32>
      %41 = vector.broadcast %19 : vector<8x1xf32> to vector<8x128xf32>
      %42 = arith.mulf %40, %41 : vector<8x128xf32>
      %43 = arith.addf %36, %42 : vector<8x128xf32>
      %44 = vector.broadcast %16 : vector<1x128xf32> to vector<8x128xf32>
      %45 = arith.mulf %30, %44 : vector<8x128xf32>
      %46 = vector.broadcast %34 : vector<1x128xf32> to vector<8x128xf32>
      %47 = arith.mulf %46, %14 : vector<8x128xf32>
      %48 = arith.addf %45, %47 : vector<8x128xf32>
      %49 = arith.mulf %30, %30 : vector<8x128xf32>
      %50 = vector.broadcast %17 : vector<1x128xf32> to vector<8x128xf32>
      %51 = arith.mulf %49, %50 : vector<8x128xf32>
      %52 = vector.broadcast %34 : vector<1x128xf32> to vector<8x128xf32>
      %53 = arith.mulf %30, %52 : vector<8x128xf32>
      %cst_24 = arith.constant 2.000000e+00 : f32
      %54 = vector.broadcast %cst_24 : f32 to vector<8x128xf32>
      %55 = arith.mulf %54, %53 : vector<8x128xf32>
      %56 = arith.mulf %55, %21 : vector<8x128xf32>
      %57 = arith.addf %51, %56 : vector<8x128xf32>
      %58 = arith.mulf %34, %34 : vector<1x128xf32>
      %59 = vector.broadcast %58 : vector<1x128xf32> to vector<8x128xf32>
      %60 = vector.broadcast %19 : vector<8x1xf32> to vector<8x128xf32>
      %61 = arith.mulf %59, %60 : vector<8x128xf32>
      %62 = arith.addf %57, %61 : vector<8x128xf32>
      %63 = arith.mulf %43, %43 : vector<8x128xf32>
      %cst_25 = arith.constant 0.699999988 : f32
      %64 = vector.broadcast %cst_25 : f32 to vector<8x128xf32>
      %65 = arith.mulf %64, %62 : vector<8x128xf32>
      %66 = arith.subf %63, %65 : vector<8x128xf32>
      %cst_26 = arith.constant 1.000000e-15 : f32
      %67 = vector.broadcast %cst_26 : f32 to vector<8x128xf32>
      %68 = arith.maximumf %66, %67 : vector<8x128xf32>
      %cst_27 = arith.constant 1.673320e+00 : f32
      %69 = vector.broadcast %cst_27 : f32 to vector<8x128xf32>
      %70 = arith.mulf %69, %48 : vector<8x128xf32>
      %71 = arith.mulf %70, %43 : vector<8x128xf32>
      %72 = vector.broadcast %18 : vector<1x128xf32> to vector<8x128xf32>
      %73 = arith.mulf %71, %72 : vector<8x128xf32>
      %74 = tpu.reciprocal %68 {approx = true} : vector<8x128xf32> -> vector<8x128xf32>
      %75 = arith.mulf %73, %74 : vector<8x128xf32>
      %76 = math.absf %75 : vector<8x128xf32>
      %77 = arith.mulf %76, %76 : vector<8x128xf32>
      %cst_28 = arith.constant 1.000000e+00 : f32
      %78 = vector.broadcast %cst_28 : f32 to vector<8x128xf32>
      %79 = arith.addf %77, %78 : vector<8x128xf32>
      %80 = math.sqrt %79 : vector<8x128xf32>
      %81 = arith.addf %76, %80 : vector<8x128xf32>
      %82 = math.log %81 : vector<8x128xf32>
      %cst_29 = arith.constant 0.000000e+00 : f32
      %83 = vector.broadcast %cst_29 : f32 to vector<8x128xf32>
      %84 = arith.cmpf olt, %75, %83 : vector<8x128xf32>
      %cst_30 = arith.constant 0.000000e+00 : f32
      %85 = vector.broadcast %cst_30 : f32 to vector<8x128xf32>
      %86 = arith.subf %85, %82 : vector<8x128xf32>
      %87 = arith.select %84, %86, %82 : vector<8x128xi1>, vector<8x128xf32>
      %cst_31 = arith.constant 1.19522858 : f32
      %88 = vector.broadcast %cst_31 : f32 to vector<8x128xf32>
      %89 = arith.mulf %87, %88 : vector<8x128xf32>
      %c0_32 = arith.constant 0 : index
      %c0_33 = arith.constant 0 : index
      %90 = vector.load %arg7[%c0_32, %c0_33] : memref<8x128xf32, #tpu.memory_space<vmem>>, vector<8x128xf32>
      tpu.vector_store %arg7[%c0_32, %c0_33], %89 {strides = array<i32>} : memref<8x128xf32, #tpu.memory_space<vmem>>, vector<8x128xf32>,
    } else {
    }
    return
  }
  func.func @transform_0(%arg0: i32, %arg1: i32, %arg2: i32) -> (i32, i32) {
    %c0_i32 = arith.constant 0 : i32
    return %arg1, %arg2 : i32, i32
  }
  func.func @transform_1(%arg0: i32, %arg1: i32, %arg2: i32) -> (i32, i32) {
    %c0_i32 = arith.constant 0 : i32
    return %arg2, %arg0 : i32, i32
  }
  func.func @transform_2(%arg0: i32, %arg1: i32, %arg2: i32) -> (i32, i32) {
    %c0_i32 = arith.constant 0 : i32
    %c0_i32_0 = arith.constant 0 : i32
    return %arg1, %c0_i32 : i32, i32
  }
  func.func @transform_3(%arg0: i32, %arg1: i32, %arg2: i32) -> (i32, i32) {
    %c0_i32 = arith.constant 0 : i32
    %c0_i32_0 = arith.constant 0 : i32
    return %c0_i32, %arg0 : i32, i32
  }
  func.func @transform_4(%arg0: i32, %arg1: i32, %arg2: i32) -> (i32, i32) {
    %c0_i32 = arith.constant 0 : i32
    return %arg1, %arg0 : i32, i32
  }
}

</mosaic_0001>

<llo_original>
// kernel: tpu_custom_call.1
$region0: #{tpu_custom_call.1}
  #allocation0 [shape = 'u32[]', space=smem, size = 0x4, offset = 0x4, fixed_abs, tag = 'smem constant byte address 0x4 - core index']
  #allocation1 [shape = 'u32[144,128]{1,0:T(1,128)}', space=vmem, size = 0x12000, scoped, tag = 'internal scratch']
  #allocation2 [shape = 'f32[8,256]{1,0:T(8,128)}', space=vmem, size = 0x2000, scoped, tag = 'scratch operand']
  %s0 = inlined_call_operand.vmem [shape: bf16[16,32], index: 0, kind: input, shape index: {}]
  %s1 = inlined_call_operand.hbm [shape: bf16[32,256], index: 1, kind: input, shape index: {}]
  %s2 = inlined_call_operand.vmem [shape: f32[16,1], index: 2, kind: input, shape index: {}]
  %s3 = inlined_call_operand.vmem [shape: f32[8,128], index: 3, kind: input, shape index: {}]
  %s4 = inlined_call_operand.hbm [shape: f32[16,128], index: 4, kind: output, shape index: {}]
  %s5 = sld [smem:[#allocation0]]
  $region65: #{tpu_custom_call.1} parent=0
    _
  %s7 = ssub.s32 1, %s5
  %s8 = scalar_select 0, %s7, %s5
  $region1: #{tpu_custom_call.1} parent=0
    #allocation3 [shape = 'u8[16384]{0}', space=vmem, size = 0x4000, scoped, tag = 'input window, operand 1, single buffered']
    #allocation4 [shape = 's32[2]{0}', space=sflag, size = 0x8, scoped, tag = 'scoped memory for tpu_custom_call.1']
    #allocation5 [shape = 's32[2]{0}', space=sflag, size = 0x8, scoped, tag = 'scoped memory for tpu_custom_call.1']
    #allocation6 [shape = 'u8[8192]{0}', space=vmem, size = 0x2000, scoped, tag = 'output window, operand 0']
    %9 = vsyncpa [#allocation4], 0
    %10 = vsyncpa [#allocation5], 0
    %s11 = scalar_lea.sflag [#allocation5], 1
    %12 = vsyncpa %s11, 0
    loop: start=0, step=1, limit=4
    $region2: #{tpu_custom_call.1} parent=1 // loop_pre_header
      _
    $region3: #{tpu_custom_call.1} parent=1 // loop_header
      %s14 = sphi 0, %s18
      %p15 = scmp.ge.s32.totalorder %s14, 4
      %s21 = sphi 0, %s40
      %s22 = sphi 0, %s36
      %s23 = sphi 0, %s32
      %s24 = sphi 0, %s21
      %s25 = sphi 0, %s22
      %s26 = sphi 0, %s23
      %s27 = sphi 0, %s24
      %s28 = sphi 0, %s25
      %s29 = sphi 0, %s26
      %s45 = sphi 0, %s47
      %s48 = sphi 0, %s45
      %s49 = sphi 0, %s48
      %s65 = sphi 0, %s49
      %s73 = sphi 0, %s75
      %s76 = sphi 0, %s73
      %s77 = sphi 0, %s76
      %s93 = sphi 0, %s77
      %s99 = sphi 0, %s101
      %s102 = sphi 0, %s99
      %s103 = sphi 0, %s102
      %s119 = sphi 0, %s103
      %s125 = sphi 0, %s127
      %s128 = sphi 0, %s125
      %s129 = sphi 0, %s128
      %s145 = sphi 0, %s129
      %s153 = sphi 0, %s155
      %s156 = sphi 0, %s153
      %s157 = sphi 0, %s156
      %s173 = sphi 0, %s157
    $region4: #{tpu_custom_call.1} parent=1 // loop_header_branch
      %17 = sbr.rel (%p15) target = $region8
    $region5: #{tpu_custom_call.1} parent=1 // loop_body
      %s19 = ssub.s32 %s14, 1
      %s20 = ssub.s32 %s14, 2
      %s30 = sadd.s32 1, %s23
      %p31 = scmp.ge.s32.totalorder %s30, 1
      %s32 = scalar_select %p31, 0, %s30
      %s33 = sadd.s32 1, %s22
      %s34 = scalar_select %p31, %s33, %s22
      %p35 = scmp.ge.s32.totalorder %s34, 2
      %s36 = scalar_select %p35, 0, %s34
      %s37 = sadd.s32 1, %s21
      %s38 = scalar_select %p35, %s37, %s21
      %p39 = scmp.ge.s32.totalorder %s38, 1
      %s40 = scalar_select %p39, 0, %s38
      %s41 = ssub.s32 %s22, %s36
      %s42 = ssub.s32 %s23, %s32
      %s43 = sor.u32 %s41, %s42
      %p44 = scmp.eq.s32.totalorder %s43, 0
      %s46 = sadd.s32 %s45, 1
      %s47 = scalar_select %p44, %s45, %s46
      %p50 = pneg %p44
      %p51 = scmp.eq.s32.totalorder %s14, 1
      %p52 = por %p50, %p51
      %p53 = scmp.ne.s32.totalorder %s45, %s48
      %p54 = scmp.eq.s32.totalorder %s14, 0
      %p55 = por %p53, %p54
      %p56 = scmp.ne.s32.totalorder %s45, %s48
      %p57 = scmp.eq.s32.totalorder %s19, 1
      %p58 = por %p56, %p57
      %p59 = scmp.ne.s32.totalorder %s48, %s49
      %p60 = scmp.eq.s32.totalorder %s19, 0
      %p61 = por %p59, %p60
      %p62 = scmp.ne.s32.totalorder %s48, %s49
      %p63 = scmp.eq.s32.totalorder %s20, 1
      %p64 = por %p62, %p63
      %p66 = scmp.ne.s32.totalorder %s49, %s65
      %p67 = scmp.eq.s32.totalorder %s20, 0
      %p68 = por %p66, %p67
      %s69 = ssub.s32 %s23, %s32
      %s70 = ssub.s32 %s21, %s40
      %s71 = sor.u32 %s69, %s70
      %p72 = scmp.eq.s32.totalorder %s71, 0
      %s74 = sadd.s32 %s73, 1
      %s75 = scalar_select %p72, %s73, %s74
      %p78 = pneg %p72
      %p79 = scmp.eq.s32.totalorder %s14, 1
      %p80 = por %p78, %p79
      %p81 = scmp.ne.s32.totalorder %s73, %s76
      %p82 = scmp.eq.s32.totalorder %s14, 0
      %p83 = por %p81, %p82
      %p84 = scmp.ne.s32.totalorder %s73, %s76
      %p85 = scmp.eq.s32.totalorder %s19, 1
      %p86 = por %p84, %p85
      %p87 = scmp.ne.s32.totalorder %s76, %s77
      %p88 = scmp.eq.s32.totalorder %s19, 0
      %p89 = por %p87, %p88
      %p90 = scmp.ne.s32.totalorder %s76, %s77
      %p91 = scmp.eq.s32.totalorder %s20, 1
      %p92 = por %p90, %p91
      %p94 = scmp.ne.s32.totalorder %s77, %s93
      %p95 = scmp.eq.s32.totalorder %s20, 0
      %p96 = por %p94, %p95
      %s97 = ssub.s32 %s22, %s36
      %p98 = scmp.eq.s32.totalorder %s97, 0
      %s100 = sadd.s32 %s99, 1
      %s101 = scalar_select %p98, %s99, %s100
      %p104 = pneg %p98
      %p105 = scmp.eq.s32.totalorder %s14, 1
      %p106 = por %p104, %p105
      %p107 = scmp.ne.s32.totalorder %s99, %s102
      %p108 = scmp.eq.s32.totalorder %s14, 0
      %p109 = por %p107, %p108
      %p110 = scmp.ne.s32.totalorder %s99, %s102
      %p111 = scmp.eq.s32.totalorder %s19, 1
      %p112 = por %p110, %p111
      %p113 = scmp.ne.s32.totalorder %s102, %s103
      %p114 = scmp.eq.s32.totalorder %s19, 0
      %p115 = por %p113, %p114
      %p116 = scmp.ne.s32.totalorder %s102, %s103
      %p117 = scmp.eq.s32.totalorder %s20, 1
      %p118 = por %p116, %p117
      %p120 = scmp.ne.s32.totalorder %s103, %s119
      %p121 = scmp.eq.s32.totalorder %s20, 0
      %p122 = por %p120, %p121
      %s123 = ssub.s32 %s21, %s40
      %p124 = scmp.eq.s32.totalorder %s123, 0
      %s126 = sadd.s32 %s125, 1
      %s127 = scalar_select %p124, %s125, %s126
      %p130 = pneg %p124
      %p131 = scmp.eq.s32.totalorder %s14, 1
      %p132 = por %p130, %p131
      %p133 = scmp.ne.s32.totalorder %s125, %s128
      %p134 = scmp.eq.s32.totalorder %s14, 0
      %p135 = por %p133, %p134
      %p136 = scmp.ne.s32.totalorder %s125, %s128
      %p137 = scmp.eq.s32.totalorder %s19, 1
      %p138 = por %p136, %p137
      %p139 = scmp.ne.s32.totalorder %s128, %s129
      %p140 = scmp.eq.s32.totalorder %s19, 0
      %p141 = por %p139, %p140
      %p142 = scmp.ne.s32.totalorder %s128, %s129
      %p143 = scmp.eq.s32.totalorder %s20, 1
      %p144 = por %p142, %p143
      %p146 = scmp.ne.s32.totalorder %s129, %s145
      %p147 = scmp.eq.s32.totalorder %s20, 0
      %p148 = por %p146, %p147
      %s149 = ssub.s32 %s22, %s36
      %s150 = ssub.s32 %s21, %s40
      %s151 = sor.u32 %s149, %s150
      %p152 = scmp.eq.s32.totalorder %s151, 0
      %s154 = sadd.s32 %s153, 1
      %s155 = scalar_select %p152, %s153, %s154
      %p158 = pneg %p152
      %p159 = scmp.eq.s32.totalorder %s14, 1
      %p160 = por %p158, %p159
      %p161 = scmp.ne.s32.totalorder %s153, %s156
      %p162 = scmp.eq.s32.totalorder %s14, 0
      %p163 = por %p161, %p162
      %p164 = scmp.ne.s32.totalorder %s153, %s156
      %p165 = scmp.eq.s32.totalorder %s19, 1
      %p166 = por %p164, %p165
      %p167 = scmp.ne.s32.totalorder %s156, %s157
      %p168 = scmp.eq.s32.totalorder %s19, 0
      %p169 = por %p167, %p168
      %p170 = scmp.ne.s32.totalorder %s156, %s157
      %p171 = scmp.eq.s32.totalorder %s20, 1
      %p172 = por %p170, %p171
      %p174 = scmp.ne.s32.totalorder %s157, %s173
      %p175 = scmp.eq.s32.totalorder %s20, 0
      %p176 = por %p174, %p175
      %p177 = scmp.le.s32.totalorder 1, %s14
      %p178 = scmp.lt.s32.totalorder %s14, 3
      %p179 = pnand %p177, %p178
      %p180 = pneg %p179
      // Predicated region
      $region9: #{tpu_custom_call.1} parent=5 // pred_check
        _
      $region10: #{tpu_custom_call.1} parent=5 // pred_check_branch
        %182 = sbr.rel (%p179) target = $region12
      $region11: #{tpu_custom_call.1} parent=5 // pred_region
        %s183 = ssub.s32 %s14, 1
        // Predicated region
        $region13: #{tpu_custom_call.1} parent=11 // pred_check
          %p184 = pneg %p89
        $region14: #{tpu_custom_call.1} parent=11 // pred_check_branch
          %186 = sbr.rel (%p184) target = $region16
        $region15: #{tpu_custom_call.1} parent=11 // pred_region
          %s187 = smul.u32 4, %s26
          %s188 = smul.u32 2, %s24
          %s190 = ssub.s32 512, 512
          %191 = vsyncadd [#allocation4], %s190
          %s192 = smul.addr %s187, 2
          %s193 = sadd.s32 %s188, %s192
          %s194 = smul.addr %s193, 64
          %s195 = scalar_lea.hbm %s1, %s194
          %s196 = sshll.u32 [#allocation3], 4
          %s197 = int_to_ptr.vmem [resolvable:$true] %s196
          %202 = dma.hbm_to_vmem [thread:$0]  %s195, 512, %s197, [#allocation4], 128, 128, 8
        $region16: #{tpu_custom_call.1} parent=11 // pred_fallthru
          _
        // Predicated region
        $region17: #{tpu_custom_call.1} parent=11 // pred_check
          %p203 = pneg %p141
        $region18: #{tpu_custom_call.1} parent=11 // pred_check_branch
          %205 = sbr.rel (%p203) target = $region20
        $region19: #{tpu_custom_call.1} parent=11 // pred_region
          %p206 = scmp.lt.s32.totalorder %s24, 0
          %s207 = scalar_select %p206, %s24, 0
          %s208 = smul.addr %s207, 8
          %s209 = scalar_lea.vmem %s3, %s208
        $region20: #{tpu_custom_call.1} parent=11 // pred_fallthru
          _
      $region12: #{tpu_custom_call.1} parent=5 // pred_fallthru
        _
      %p210 = scmp.lt.s32.totalorder %s14, 2
      // Predicated region
      $region21: #{tpu_custom_call.1} parent=5 // pred_check
        %p211 = pneg %p210
      $region22: #{tpu_custom_call.1} parent=5 // pred_check_branch
        %213 = sbr.rel (%p211) target = $region24
      $region23: #{tpu_custom_call.1} parent=5 // pred_region
        // Predicated region
        $region25: #{tpu_custom_call.1} parent=23 // pred_check
          %p214 = pneg %p55
        $region26: #{tpu_custom_call.1} parent=23 // pred_check_branch
          %216 = sbr.rel (%p214) target = $region28
        $region27: #{tpu_custom_call.1} parent=23 // pred_region
          %p217 = scmp.lt.s32.totalorder %s22, 1
          %s218 = scalar_select %p217, %s22, 1
          %p219 = scmp.lt.s32.totalorder %s23, 0
          %s220 = scalar_select %p219, %s23, 0
          %s221 = sadd.s32 %s220, %s218
          %s222 = smul.addr %s221, 4
          %s223 = scalar_lea.vmem %s0, %s222
        $region28: #{tpu_custom_call.1} parent=23 // pred_fallthru
          _
        // Predicated region
        $region29: #{tpu_custom_call.1} parent=23 // pred_check
          %p224 = pneg %p109
        $region30: #{tpu_custom_call.1} parent=23 // pred_check_branch
          %226 = sbr.rel (%p224) target = $region32
        $region31: #{tpu_custom_call.1} parent=23 // pred_region
          %p227 = scmp.lt.s32.totalorder %s22, 1
          %s228 = scalar_select %p227, %s22, 1
          %s229 = smul.addr %s228, 8
          %s230 = scalar_lea.vmem %s2, %s229
        $region32: #{tpu_custom_call.1} parent=23 // pred_fallthru
          _
      $region24: #{tpu_custom_call.1} parent=5 // pred_fallthru
        _
      %p231 = scmp.le.s32.totalorder 1, %s14
      %p232 = scmp.lt.s32.totalorder %s14, 3
      %p233 = pnand %p231, %p232
      %p234 = pneg %p233
      // Predicated region
      $region33: #{tpu_custom_call.1} parent=5 // pred_check
        _
      $region34: #{tpu_custom_call.1} parent=5 // pred_check_branch
        %236 = sbr.rel (%p233) target = $region36
      $region35: #{tpu_custom_call.1} parent=5 // pred_region
        %s237 = ssub.s32 %s14, 1
        // Predicated region
        $region37: #{tpu_custom_call.1} parent=35 // pred_check
          %p238 = pneg %p89
        $region38: #{tpu_custom_call.1} parent=35 // pred_check_branch
          %240 = sbr.rel (%p238) target = $region40
        $region39: #{tpu_custom_call.1} parent=35 // pred_region
          %241 = dma.done [#allocation4], 512
        $region40: #{tpu_custom_call.1} parent=35 // pred_fallthru
          _
        %p242 = scmp.lt.s32.totalorder %s25, 1
        %s243 = scalar_select %p242, %s25, 1
        %p244 = scmp.lt.s32.totalorder %s26, 0
        %s245 = scalar_select %p244, %s26, 0
        %s246 = sadd.s32 %s245, %s243
        %s247 = smul.addr %s246, 4
        %s248 = scalar_lea.vmem %s0, %s247
        %p249 = pneg %p61
        %p250 = pneg %p58
        %p251 = pneg %p89
        %p252 = pneg %p86
        %p253 = scmp.lt.s32.totalorder %s25, 1
        %s254 = scalar_select %p253, %s25, 1
        %s255 = smul.addr %s254, 8
        %s256 = scalar_lea.vmem %s2, %s255
        %p257 = pneg %p115
        %p258 = pneg %p112
        %p259 = scmp.lt.s32.totalorder %s24, 0
        %s260 = scalar_select %p259, %s24, 0
        %s261 = smul.addr %s260, 8
        %s262 = scalar_lea.vmem %s3, %s261
        %p263 = pneg %p141
        %p264 = pneg %p138
        %p265 = pneg %p169
        %p266 = pneg %p166
        %s267 = sand.u32 %s156, 1
        %s268 = scalar_lea.sflag [#allocation5], %s267
        %s269 = sand.u32 %s156, 1
        %s270 = smul.addr %s269, 8
        %s271 = scalar_lea.vmem [#allocation6], %s270
        %p272 = scmp.lt.s32.totalorder %s25, 1
        %s273 = scalar_select %p272, %s25, 1
        %p274 = scmp.lt.s32.totalorder %s26, 0
        %s275 = scalar_select %p274, %s26, 0
        %s276 = sadd.s32 %s275, %s273
        %s277 = smul.addr %s276, 4
        %s278 = scalar_lea.vmem %s0, %s277
        %s279 = smul.u32 4, %s26
        %s280 = smul.u32 2, %s24
        %p281 = scmp.lt.s32.totalorder %s25, 1
        %s282 = scalar_select %p281, %s25, 1
        %s283 = smul.addr %s282, 8
        %s284 = scalar_lea.vmem %s2, %s283
        %p285 = scmp.lt.s32.totalorder %s24, 0
        %s286 = scalar_select %p285, %s24, 0
        %s287 = smul.addr %s286, 8
        %s288 = scalar_lea.vmem %s3, %s287
        %v290 = vld [vmem:[%s278] sm:$0xf]
        %v291 = vld [vmem:[#allocation3] sm:$0xff]
        %v292 = vld [vmem:[#allocation3 + $0x8] sm:$0xff]
        %v293 = vld [vmem:[#allocation3 + $0x10] sm:$0xff]
        %v294 = vld [vmem:[#allocation3 + $0x18] sm:$0xff]
        %v299 = vunpack.c.l.b16 %v291
        %v300 = vunpack.c.h.b16 %v291
        %v301 = vunpack.c.l.b16 %v292
        %v302 = vunpack.c.h.b16 %v292
        %v303 = vunpack.c.l.b16 %v293
        %v304 = vunpack.c.h.b16 %v293
        %v305 = vunpack.c.l.b16 %v294
        %v306 = vunpack.c.h.b16 %v294
        %v307 = vpack.c.b16 %v301, %v299
        %v308 = vpack.c.b16 %v302, %v300
        %v309 = vpack.c.b16 %v305, %v303
        %v310 = vpack.c.b16 %v306, %v304
        %vm315 = vcmask 261120
        %v317 = vsel %vm315, %v290, 0
        %319 = vmatprep.subr.bf16.mxu0 %v308
        %320 = vmatpush1.bf16.msra.mxu0 %v307
        %321 = vmatprep.subr.bf16.mxu0 %v310
        %322 = vmatpush1.bf16.msra.mxu0 %v309
        %323 = vmatprep.subr.bf16.mxu0 0
        %324 = vmatpush1.bf16.msra.mxu0 0
        %325 = vmatprep.subr.bf16.mxu0 0
        %326 = vmatpush1.bf16.msra.mxu0 0
        %327 = vmatprep.subr.bf16.mxu0 0
        %328 = vmatpush1.bf16.msra.mxu0 0
        %329 = vmatprep.subr.bf16.mxu0 0
        %330 = vmatpush1.bf16.msra.mxu0 0
        %331 = vmatprep.subr.bf16.mxu0 0
        %332 = vmatpush1.bf16.msra.mxu0 0
        %333 = vmatprep.subr.bf16.mxu0 0
        %334 = vmatpush1.bf16.msra.mxu0 0
        %335 = vmatprep.subr.bf16.mxu0 0
        %336 = vmatpush1.bf16.msra.mxu0 0
        %337 = vmatprep.subr.bf16.mxu0 0
        %338 = vmatpush1.bf16.msra.mxu0 0
        %339 = vmatprep.subr.bf16.mxu0 0
        %340 = vmatpush1.bf16.msra.mxu0 0
        %341 = vmatprep.subr.bf16.mxu0 0
        %342 = vmatpush1.bf16.msra.mxu0 0
        %343 = vmatprep.subr.bf16.mxu0 0
        %344 = vmatpush1.bf16.msra.mxu0 0
        %345 = vmatprep.subr.bf16.mxu0 0
        %346 = vmatpush1.bf16.msra.mxu0 0
        %347 = vmatprep.subr.bf16.mxu0 0
        %348 = vmatpush1.bf16.msra.mxu0 0
        %349 = vmatprep.subr.bf16.mxu0 0
        %350 = vmatpush1.bf16.msra.mxu0 0
        %351 = vmatprep.mubr.bf16.mxu0 0
        %352 = vmatmul.mubr.bf16.gmra.mrb[0].mxu0 %v317
        %v353 = vpop.f32.mrb[0].mxu0
        %v354 = vadd.f32 0.0, %v353
        %v355 = vpop.f32.mrb[0].mxu0
        %v356 = vadd.f32 0.0, %v355
        %v357 = vpop.f32.mrb[0].mxu0
        %v358 = vpop.f32.mrb[0].mxu0
        %359 = vdwg.mxu0
        %p360 = scmp.eq.s32.totalorder %s26, 0
        // Predicated region
        $region41: #{tpu_custom_call.1} parent=35 // pred_check
          %p361 = pneg %p360
        $region42: #{tpu_custom_call.1} parent=35 // pred_check_branch
          %363 = sbr.rel (%p361) target = $region44
        $region43: #{tpu_custom_call.1} parent=35 // pred_region
          %364 = vst [vmem:[#allocation2] sm:$0xff] %v354
          %365 = vst [vmem:[#allocation2 + $0x8] sm:$0xff] %v356
        $region44: #{tpu_custom_call.1} parent=35 // pred_fallthru
          _
        %p366 = scmp.gt.s32.totalorder %s26, 0
        // Predicated region
        $region45: #{tpu_custom_call.1} parent=35 // pred_check
          %p367 = pneg %p366
        $region46: #{tpu_custom_call.1} parent=35 // pred_check_branch
          %369 = sbr.rel (%p367) target = $region48
        $region47: #{tpu_custom_call.1} parent=35 // pred_region
          %v370 = vld [vmem:[#allocation2] sm:$0xff]
          %v371 = vld [vmem:[#allocation2 + $0x8] sm:$0xff]
          %v372 = vadd.f32 %v370, %v354
          %v373 = vadd.f32 %v371, %v356
          %374 = vst [vmem:[#allocation2] sm:$0xff] %v372
          %375 = vst [vmem:[#allocation2 + $0x8] sm:$0xff] %v373
        $region48: #{tpu_custom_call.1} parent=35 // pred_fallthru
          _
        // Predicated region
        $region49: #{tpu_custom_call.1} parent=35 // pred_check
          %p376 = pneg %p360
        $region50: #{tpu_custom_call.1} parent=35 // pred_check_branch
          %378 = sbr.rel (%p376) target = $region52
        $region51: #{tpu_custom_call.1} parent=35 // pred_region
          %v379 = vld [vmem:[#allocation2] sm:$0xff]
          %v380 = vld [vmem:[#allocation2 + $0x8] sm:$0xff]
          %v381 = vld [vmem:[%s288] sm:$0xff]
          %v382 = vld [vmem:[%s284] sm:$0xff]
          %v383 = vsub.f32 0.0, %v379
          %v384 = vmul.f32 %v383, 1.4
          %v385 = vadd.f32 %v384, 1.0
          %v386 = vmul.f32 %v382, 0.7
          %388 = vset.pattern.permute.xlu0 0
          %389 = vperm.xlu0 %388, %v386
          %v390 = vpop.permute.xlu0 %389
          %v392 = vadd.f32 %v385, %v390
          %v393 = vmul.f32 %v381, 0.7
          %v394 = vsub.f32 1.0, %v393
          %v395 = vmul.f32 %v381, 0.48999998
          %v396 = vlaneseq
          %v397 = vshrl.u32 %v396, 7
          %v398 = vsub.s32 1, %v397
          %v399 = vrot.slane %v395, %v398
          %401 = vset.pattern.permute.xlu0 0
          %402 = vperm.xlu0 %401, %v382
          %v403 = vpop.permute.xlu0 %402
          %v405 = vmul.f32 %v399, %v403
          %v406 = vadd.f32 %v385, %v405
          %v407 = vlaneseq
          %v408 = vshrl.u32 %v407, 7
          %v409 = vsub.s32 0, %v408
          %v410 = vrot.slane %v381, %v409
          %v411 = vmul.f32 %v392, %v410
          %v412 = vlaneseq
          %v413 = vshrl.u32 %v412, 7
          %v414 = vsub.s32 1, %v413
          %v415 = vrot.slane %v394, %v414
          %v416 = vmul.f32 %v415, %v380
          %v417 = vadd.f32 %v411, %v416
          %v418 = vmul.f32 %v392, %v392
          %v419 = vlaneseq
          %v420 = vshrl.u32 %v419, 7
          %v421 = vsub.s32 1, %v420
          %v422 = vrot.slane %v381, %v421
          %v423 = vmul.f32 %v418, %v422
          %v424 = vmul.f32 %v392, %v415
          %v425 = vmul.f32 %v424, 2.0
          %v426 = vmul.f32 %v425, %v383
          %v427 = vadd.f32 %v423, %v426
          %v428 = vmul.f32 %v394, %v394
          %v429 = vlaneseq
          %v430 = vshrl.u32 %v429, 7
          %v431 = vsub.s32 1, %v430
          %v432 = vrot.slane %v428, %v431
          %v433 = vmul.f32 %v432, %v403
          %v434 = vadd.f32 %v427, %v433
          %v435 = vmul.f32 %v406, %v406
          %v436 = vmul.f32 %v434, 0.7
          %v437 = vsub.f32 %v435, %v436
          %v438 = vmax.f32 %v437, 1e-15
          %v439 = vmul.f32 %v417, 1.67332
          %v440 = vmul.f32 %v439, %v406
          %v441 = vlaneseq
          %v442 = vshrl.u32 %v441, 7
          %v443 = vsub.s32 2, %v442
          %v444 = vrot.slane %v381, %v443
          %v445 = vmul.f32 %v440, %v444
          %v446 = vrcp.pop %v438
          %v447 = vmul.f32 %v445, %v446
          %v448 = vand.u32 2147483647, %v447
          %v449 = vmul.f32 %v448, %v448
          %v450 = vadd.f32 %v449, 1.0
          %v451 = vrsqrt.pop %v450
          %v452 = vmul.f32 %v450, %v451
          %vm453 = vcmp.eq.f32.partialorder %v450, inf
          %v454 = vsel %vm453, %v450, %v452
          %vm455 = vcmp.eq.f32.partialorder %v450, 0.0
          %v456 = vand.u32 %v450, 2147483648
          %v457 = vsel %vm455, %v456, %v454
          %v458 = vadd.f32 %v448, %v457
          %v459 = vlog2.pop %v458
          %v460 = vmul.f32 %v459, 0.6931472
          %vm461 = vcmp.lt.f32.partialorder %v447, 0.0
          %v462 = vsub.f32 0.0, %v460
          %v463 = vsel %vm461, %v462, %v460
          %v464 = vmul.f32 %v463, 1.1952286
          %465 = vst [vmem:[%s271] sm:$0xff] %v464
        $region52: #{tpu_custom_call.1} parent=35 // pred_fallthru
          _
        %s466 = sand.u32 %s156, 1
        %s467 = scalar_lea.sflag [#allocation5], %s466
        %s468 = sand.u32 %s156, 1
        %s469 = smul.addr %s468, 8
        %s470 = scalar_lea.vmem [#allocation6], %s469
        // Predicated region
        $region53: #{tpu_custom_call.1} parent=35 // pred_check
          %p471 = pneg %p166
        $region54: #{tpu_custom_call.1} parent=35 // pred_check_branch
          %473 = sbr.rel (%p471) target = $region56
        $region55: #{tpu_custom_call.1} parent=35 // pred_region
          %s475 = ssub.s32 128, 128
          %476 = vsyncadd %s467, %s475
          %s477 = sadd.s32 %s24, %s25
          %s478 = smul.addr %s477, 128
          %s479 = scalar_lea.hbm %s4, %s478
          %s481 = sshll.u32 %s470, 4
          %s482 = int_to_ptr.vmem [resolvable:$true] %s481
          %484 = dma.vmem_to_hbm [thread:$0]  %s482, 128, %s479, %s467
        $region56: #{tpu_custom_call.1} parent=35 // pred_fallthru
          _
      $region36: #{tpu_custom_call.1} parent=5 // pred_fallthru
        _
      %p485 = scmp.le.s32.totalorder 2, %s14
      // Predicated region
      $region57: #{tpu_custom_call.1} parent=5 // pred_check
        %p486 = pneg %p485
      $region58: #{tpu_custom_call.1} parent=5 // pred_check_branch
        %488 = sbr.rel (%p486) target = $region60
      $region59: #{tpu_custom_call.1} parent=5 // pred_region
        %s489 = ssub.s32 %s14, 2
        // Predicated region
        $region61: #{tpu_custom_call.1} parent=59 // pred_check
          %p490 = pneg %p172
        $region62: #{tpu_custom_call.1} parent=59 // pred_check_branch
          %492 = sbr.rel (%p490) target = $region64
        $region63: #{tpu_custom_call.1} parent=59 // pred_region
          %s493 = sand.u32 %s157, 1
          %s494 = scalar_lea.sflag [#allocation5], %s493
          %s495 = sand.u32 %s157, 1
          %s496 = smul.addr %s495, 8
          %s497 = scalar_lea.vmem [#allocation6], %s496
          %498 = dma.done %s494, 128
        $region64: #{tpu_custom_call.1} parent=59 // pred_fallthru
          _
      $region60: #{tpu_custom_call.1} parent=5 // pred_fallthru
        _
    $region6: #{tpu_custom_call.1} parent=1 // loop_footer
      %s18 = sadd.s32 1, %s14
    $region7: #{tpu_custom_call.1} parent=1 // loop_footer_branch
      %13 = sbr.rel target = $region3
    $region8: #{tpu_custom_call.1} parent=1 // loop_exit
      _
    %499 = vsyncpa [#allocation4], 1
    %s500 = scalar_lea.sflag [#allocation4], 1
    %501 = vsyncpa %s500, 1
    %502 = vsyncpa [#allocation5], 1
    %s503 = scalar_lea.sflag [#allocation5], 1
    %504 = vsyncpa %s503, 1

</llo_original>
